<compile_context>
chip_gen: v6e
topology: v6e:2x2x1
jax: 0.10.0
libtpu: 0.0.40
codegen_flags: <defaults>
</compile_context>

<pallas_src>
import numpy as np
import jax
import jax.numpy as jnp
from jax.experimental import pallas as pl
from jax.experimental.pallas import tpu as pltpu


# -----------------------------------------------------------------------------
# Packed-parameter layout (block-fused actor+critic, 128 lanes wide)
# -----------------------------------------------------------------------------
def _round_up(x, m):
    return ((x + m - 1) // m) * m


def _build_layout(n_s):
    """Row offsets of the fused parameter blocks inside the (ROWS,128) slab."""
    ra = _round_up(max(n_s, 1), 8)     # padded state-feature dim (sublane tile)
    off = {}
    r = 0

    def add(name, h):
        nonlocal r
        off[name] = r
        r += h

    add("w1", ra)    # fused layer 1: actor fc1 lanes 0..31, critic fc1 lanes 32..47
    add("b1", 8)
    add("w2", 128)   # fused layer 2 (block-diag): actor rows 0..31 -> lanes 0..15,
    add("b2", 8)     #                             critic rows 32..47 -> lanes 16..23
    add("w3", 128)   # fused heads   (block-diag): actor rows 0..15 -> lanes 0..N_A-1,
    add("b3", 8)     #                             critic rows 16..23 -> lane 64
    return off, r, ra


def make_param_slab(key, n_s, n_a):
    """Deterministic init mirroring the torch module, packed into one fused slab."""
    assert n_a <= 64, "actor head must fit in lanes 0..63 (value lane is 64)"
    off, rows, ra = _build_layout(n_s)
    k = jax.random.split(key, 8)

    # ---- actor (Linear weights ~ N(0, 0.1), biases 0; weights stored (in,out))
    a_w1 = 0.1 * jax.random.normal(k[0], (n_s, 32), jnp.float32)
    a_w2 = 0.1 * jax.random.normal(k[1], (32, 16), jnp.float32)
    a_wmu = 0.1 * jax.random.normal(k[2], (16, n_a), jnp.float32)
    # Actor "initial" branch: random_vetor = rand(16)*4-2, replaced by 1 where
    # rand(16) < 0.5.  Fold into the mu weights: (x*rv) @ Wmu == x @ (rv[:,None]*Wmu)
    rv = jax.random.uniform(k[3], (16,), jnp.float32) * 4.0 - 2.0
    gate = jax.random.uniform(k[4], (16,), jnp.float32)
    rv = jnp.where(gate < 0.5, rv, jnp.ones_like(rv))
    a_wmu = rv[:, None] * a_wmu

    # ---- critic (fc3 weight scaled by 0.1, fc3 bias zeroed, as in the module)
    c_w1 = 0.1 * jax.random.normal(k[5], (n_s, 16), jnp.float32)
    c_w2 = 0.1 * jax.random.normal(k[6], (16, 8), jnp.float32)
    c_w3 = 0.1 * (0.1 * jax.random.normal(k[7], (8, 1), jnp.float32))

    slab = np.zeros((rows, 128), np.float32)
    # Layer 1: actor h1 in lanes 0..31, critic h1 in lanes 32..47.
    slab[off["w1"]:off["w1"] + n_s, 0:32] = np.asarray(a_w1)
    slab[off["w1"]:off["w1"] + n_s, 32:48] = np.asarray(c_w1)
    # Layer 2 (block-diag): actor h2 in lanes 0..15, critic h2 in lanes 16..23.
    slab[off["w2"] + 0:off["w2"] + 32, 0:16] = np.asarray(a_w2)
    slab[off["w2"] + 32:off["w2"] + 48, 16:24] = np.asarray(c_w2)
    # Heads (block-diag): mu logits in lanes 0..n_a-1, value in lane 64.
    slab[off["w3"] + 0:off["w3"] + 16, 0:n_a] = np.asarray(a_wmu)
    slab[off["w3"] + 16:off["w3"] + 24, 64:65] = np.asarray(c_w3)
    # All biases are zero at init (slab already zero), rows kept for generality.
    return jnp.asarray(slab), off, rows, ra


# -----------------------------------------------------------------------------
# Fused actor+critic Pallas kernel
# -----------------------------------------------------------------------------
def _make_fused_kernel(off, ra):
    """(TB, ra) states -> (TB, 128): sigmoid(mu logits) in lanes <64, value in lane 64."""
    def kernel(s_ref, p_ref, out_ref):
        s = s_ref[...]                                                   # (TB, ra)
        w1 = p_ref[off["w1"]:off["w1"] + ra, :]
        b1 = p_ref[off["b1"]:off["b1"] + 1, :]
        h = jnp.tanh(jnp.dot(s, w1, preferred_element_type=jnp.float32) + b1)
        w2 = p_ref[off["w2"]:off["w2"] + 128, :]
        b2 = p_ref[off["b2"]:off["b2"] + 1, :]
        h = jnp.tanh(jnp.dot(h, w2, preferred_element_type=jnp.float32) + b2)
        w3 = p_ref[off["w3"]:off["w3"] + 128, :]
        b3 = p_ref[off["b3"]:off["b3"] + 1, :]
        z = jnp.dot(h, w3, preferred_element_type=jnp.float32) + b3      # (TB, 128)
        # Actor lanes (<64) get sigmoid; critic value lane (64) stays linear.
        lane = jax.lax.broadcasted_iota(jnp.int32, z.shape, 1)
        out_ref[...] = jnp.where(lane < 64, jax.nn.sigmoid(z), z)
    return kernel


_MAX_TB = 512  # batch tile (rows) for the grid; bounds VMEM, enables megacore split


def _tile_for(bp):
    # bp is already padded by the host to satisfy this rule.
    return bp if bp < _MAX_TB else _MAX_TB


def _pad_rows(b):
    tb = min(_MAX_TB, _round_up(b, 8))
    return _round_up(b, tb)


def make_ppo_callables(n_s, n_a):
    off, rows, ra = _build_layout(n_s)
    kernel = _make_fused_kernel(off, ra)

    def _fused_forward(s_pad, slab):
        bp = s_pad.shape[0]
        tb = _tile_for(bp)
        return pl.pallas_call(
            kernel,
            out_shape=jax.ShapeDtypeStruct((bp, 128), jnp.float32),
            grid=(bp // tb,),
            in_specs=[pl.BlockSpec((tb, ra), lambda i: (i, 0)),
                      pl.BlockSpec((rows, 128), lambda i: (0, 0))],   # slab resident
            out_specs=pl.BlockSpec((tb, 128), lambda i: (i, 0)),
            compiler_params=pltpu.CompilerParams(
                dimension_semantics=("parallel",)),
        )(s_pad, slab)

    @jax.jit
    def actor_sample(seed, s_pad, slab):
        """Fused forward + Bernoulli(mu) sample (device-side, outside the kernel)."""
        out = _fused_forward(s_pad, slab)                 # (BP, 128) lane-dense
        mu = out[:, :n_a]
        key = jax.random.PRNGKey(seed[0])
        u = jax.random.uniform(key, mu.shape, jnp.float32)
        return (u < mu).astype(jnp.int32)                 # (BP, N_A)

    @jax.jit
    def actor_critic(s_pad, slab):
        """Fused batch evaluation: mu (BP,N_A), value (BP,1)."""
        out = _fused_forward(s_pad, slab)
        return out[:, :n_a], out[:, 64:65]

    return actor_sample, actor_critic, ra


# -----------------------------------------------------------------------------
# Host-side stateful glue (running normalization, memory)
# -----------------------------------------------------------------------------
class Nomalize:
    def __init__(self, n_s):
        self.mean = np.zeros((n_s,), dtype=np.float32)
        self.std = np.zeros((n_s,), dtype=np.float32)
        self.stdd = np.zeros((n_s,), dtype=np.float32)
        self.n = 0

    def __call__(self, x):
        x = np.asarray(x, dtype=np.float32)
        self.n += 1
        if self.n == 1:
            self.mean = x
        else:
            old_mean = self.mean.copy()
            self.mean = old_mean + ((x - old_mean) / self.n).astype(np.float32)
            self.stdd = self.stdd + (x - old_mean) * (x - self.mean)
        if self.n > 1:
            self.std = np.sqrt(self.stdd / (self.n - 1))
        else:
            self.std = self.mean
        x = x - self.mean
        denom = self.std + 1e-08
        denom = np.where(denom == 0.0, 1.0, denom)  # guard 0/0 -> NaN on step 1
        x = x / denom
        return np.clip(x, -5, +5)


class PPO:
    """Inference-time PPO.forward: normalize -> fused actor/critic Pallas kernel."""

    def __init__(self, n_s, n_a, key, sample_seed=1234):
        self.n_s, self.n_a = n_s, n_a
        self.slab, self.offsets, self.slab_rows, self.ra = make_param_slab(key, n_s, n_a)
        self.actor_sample, self.actor_critic, _ = make_ppo_callables(n_s, n_a)
        self.memory = [[], [], [], []]
        self.previous_state = None
        self.previous_action = None
        self.steps = 0
        self._sample_counter = int(sample_seed)
        self.nomalize = Nomalize(n_s)
        # TODO(synk): PPO.train() (Adam updates, GAE recursion, clipped surrogate
        # loss backward) is a host-side optimizer loop, not a forward hot path; omitted.

    def choose_action(self, state_np):
        bp = _pad_rows(1)
        s_pad = np.zeros((bp, self.ra), np.float32)
        s_pad[0, :self.n_s] = state_np
        self._sample_counter += 1
        seed = np.asarray([self._sample_counter], np.int32)
        act = self.actor_sample(seed, s_pad, self.slab)     # (BP, N_A) int32
        # NOTE: per-step wall clock is dominated by dispatch + this readback;
        # batch env steps / keep the action on-device if step rate matters.
        return np.asarray(act)[0]

    def evaluate_memory(self):
        """Training-time evaluation: fused actor+critic over the stored states."""
        states = np.vstack(self.memory[0]).astype(np.float32)
        b = states.shape[0]
        bp = _pad_rows(b)
        s_pad = np.zeros((bp, self.ra), np.float32)
        s_pad[:b, :self.n_s] = states
        mu, v = self.actor_critic(s_pad, self.slab)
        return mu[:b], v[:b]

    def __call__(self, state, intrinsic_reward, done):
        state = self.nomalize(state)
        mask = 1.0 - float(done)
        if self.previous_state is not None:
            self.memory[0].append(self.previous_state)
            self.memory[1].append(self.previous_action)
            self.memory[2].append(intrinsic_reward)
            self.memory[3].append(mask)
        action = self.choose_action(state)
        self.previous_action = action
        self.previous_state = state
        self.steps += 1
        return action


# -----------------------------------------------------------------------------
if __name__ == "__main__":
    N_S, N_A = 8, 4
    n_steps = 6

    root = jax.random.PRNGKey(0)
    k_model, k_states = jax.random.split(root)
    ppo = PPO(N_S, N_A, k_model)

    raw_states = np.asarray(jax.random.normal(k_states, (n_steps, N_S), jnp.float32))

    last_action = None
    for t in range(n_steps):
        last_action = ppo(raw_states[t], intrinsic_reward=0.1 * t,
                          done=(t == n_steps - 1))

    # Exercise the fused actor+critic kernel on the collected (normalized)
    # states, as PPO.train() would on `self.memory[0]`.
    if ppo.memory[0]:
        mu, values = ppo.evaluate_memory()
        jax.block_until_ready((mu, values))
        assert mu.shape == (len(ppo.memory[0]), N_A)
        assert values.shape == (len(ppo.memory[0]), 1)
        assert bool(jnp.all(jnp.isfinite(mu))) and bool(jnp.all(jnp.isfinite(values)))
        assert bool(jnp.all((mu >= 0.0) & (mu <= 1.0)))

    assert last_action.shape == (N_A,)
    assert set(np.unique(last_action)).issubset({0, 1})
    print("KERNEL_OK")
</pallas_src>

<mosaic_0001>
module attributes {stable_mosaic.version = 11 : i64} {
  func.func @kernel(%arg0: i32, %arg1: memref<8x8xf32, #tpu.memory_space<vmem>>, %arg2: memref<288x128xf32, #tpu.memory_space<vmem>>, %arg3: memref<8x128xf32, #tpu.memory_space<vmem>>) attributes {dimension_semantics = [#tpu.dimension_semantics<parallel>], iteration_bounds = array<i64: 1>, scalar_prefetch = 0 : i64, scratch_operands = 0 : i64, tpu.core_type = #tpu.core_type<tc>, window_params = [{transform_indices = @transform_0, window_bounds = array<i64: 8, 8>}, {pipeline_mode = #tpu.pipeline_mode<synchronous>, transform_indices = @transform_1, window_bounds = array<i64: 288, 128>}, {transform_indices = @transform_2, window_bounds = array<i64: 8, 128>}]} {
    %c0 = arith.constant 0 : index
    %c0_0 = arith.constant 0 : index
    %0 = vector.load %arg1[%c0, %c0_0] : memref<8x8xf32, #tpu.memory_space<vmem>>, vector<8x8xf32>
    %c0_1 = arith.constant 0 : index
    %c0_2 = arith.constant 0 : index
    %1 = vector.load %arg2[%c0_1, %c0_2] : memref<288x128xf32, #tpu.memory_space<vmem>>, vector<8x128xf32>
    %c8 = arith.constant 8 : index
    %c0_3 = arith.constant 0 : index
    %2 = vector.load %arg2[%c8, %c0_3] : memref<288x128xf32, #tpu.memory_space<vmem>>, vector<1x128xf32>
    %cst = arith.constant dense<0.000000e+00> : vector<8x128xf32>
    %3 = tpu.matmul %0, %1, %cst {dimension_numbers = #tpu.dot_dimension_numbers<[1], [0], [0], [1], [0, 0, 1, 1], [], []>} : vector<8x8xf32>, vector<8x128xf32>, vector<8x128xf32> -> vector<8x128xf32>
    %4 = vector.broadcast %2 : vector<1x128xf32> to vector<8x128xf32>
    %5 = arith.addf %3, %4 : vector<8x128xf32>
    %6 = math.tanh %5 : vector<8x128xf32>
    %c16 = arith.constant 16 : index
    %c0_4 = arith.constant 0 : index
    %7 = vector.load %arg2[%c16, %c0_4] : memref<288x128xf32, #tpu.memory_space<vmem>>, vector<128x128xf32>
    %c144 = arith.constant 144 : index
    %c0_5 = arith.constant 0 : index
    %8 = vector.load %arg2[%c144, %c0_5] : memref<288x128xf32, #tpu.memory_space<vmem>>, vector<1x128xf32>
    %cst_6 = arith.constant dense<0.000000e+00> : vector<8x128xf32>
    %9 = tpu.matmul %6, %7, %cst_6 {dimension_numbers = #tpu.dot_dimension_numbers<[1], [0], [0], [1], [0, 0, 1, 1], [], []>} : vector<8x128xf32>, vector<128x128xf32>, vector<8x128xf32> -> vector<8x128xf32>
    %10 = vector.broadcast %8 : vector<1x128xf32> to vector<8x128xf32>
    %11 = arith.addf %9, %10 : vector<8x128xf32>
    %12 = math.tanh %11 : vector<8x128xf32>
    %c152 = arith.constant 152 : index
    %c0_7 = arith.constant 0 : index
    %13 = vector.load %arg2[%c152, %c0_7] : memref<288x128xf32, #tpu.memory_space<vmem>>, vector<128x128xf32>
    %c280 = arith.constant 280 : index
    %c0_8 = arith.constant 0 : index
    %14 = vector.load %arg2[%c280, %c0_8] : memref<288x128xf32, #tpu.memory_space<vmem>>, vector<1x128xf32>
    %cst_9 = arith.constant dense<0.000000e+00> : vector<8x128xf32>
    %15 = tpu.matmul %12, %13, %cst_9 {dimension_numbers = #tpu.dot_dimension_numbers<[1], [0], [0], [1], [0, 0, 1, 1], [], []>} : vector<8x128xf32>, vector<128x128xf32>, vector<8x128xf32> -> vector<8x128xf32>
    %16 = vector.broadcast %14 : vector<1x128xf32> to vector<8x128xf32>
    %17 = arith.addf %15, %16 : vector<8x128xf32>
    %18 = tpu.iota {dimensions = array<i32: 1>} : vector<8x128xi32>
    %c64_i32 = arith.constant 64 : i32
    %19 = vector.broadcast %c64_i32 : i32 to vector<8x128xi32>
    %20 = arith.cmpi slt, %18, %19 : vector<8x128xi32>
    %21 = arith.negf %17 : vector<8x128xf32>
    %22 = math.exp %21 : vector<8x128xf32>
    %cst_10 = arith.constant 1.000000e+00 : f32
    %23 = vector.broadcast %cst_10 : f32 to vector<8x128xf32>
    %24 = arith.addf %23, %22 : vector<8x128xf32>
    %25 = arith.divf %23, %24 : vector<8x128xf32>
    %26 = arith.select %20, %25, %17 : vector<8x128xi1>, vector<8x128xf32>
    %c0_11 = arith.constant 0 : index
    %c0_12 = arith.constant 0 : index
    %27 = vector.load %arg3[%c0_11, %c0_12] : memref<8x128xf32, #tpu.memory_space<vmem>>, vector<8x128xf32>
    tpu.vector_store %arg3[%c0_11, %c0_12], %26 {strides = array<i32>} : memref<8x128xf32, #tpu.memory_space<vmem>>, vector<8x128xf32>,
    return
  }
  func.func @transform_0(%arg0: i32) -> (i32, i32) {
    %c0_i32 = arith.constant 0 : i32
    %c0_i32_0 = arith.constant 0 : i32
    return %arg0, %c0_i32 : i32, i32
  }
  func.func @transform_1(%arg0: i32) -> (i32, i32) {
    %c0_i32 = arith.constant 0 : i32
    %c0_i32_0 = arith.constant 0 : i32
    %c0_i32_1 = arith.constant 0 : i32
    return %c0_i32, %c0_i32_0 : i32, i32
  }
  func.func @transform_2(%arg0: i32) -> (i32, i32) {
    %c0_i32 = arith.constant 0 : i32
    %c0_i32_0 = arith.constant 0 : i32
    return %arg0, %c0_i32 : i32, i32
  }
}

</mosaic_0001>

<llo_original>
// kernel: actor_sample.1
$region0: #{actor_sample.1}
  #allocation0 [shape = 'u32[]', space=smem, size = 0x4, offset = 0x4, fixed_abs, tag = 'smem constant byte address 0x4 - core index']
  #allocation1 [shape = 'u32[144,128]{1,0:T(1,128)}', space=vmem, size = 0x12000, scoped, tag = 'internal scratch']
  %s0 = inlined_call_operand.vmem [shape: f32[8,8], index: 0, kind: input, shape index: {}]
  %s1 = inlined_call_operand.hbm [shape: f32[288,128], index: 1, kind: input, shape index: {}]
  %s2 = inlined_call_operand.vmem [shape: f32[8,128], index: 2, kind: output, shape index: {}]
  %s3 = sld [smem:[#allocation0]]
  $region22: #{actor_sample.1} parent=0
    _
  %s5 = ssub.s32 1, %s3
  %s6 = scalar_select 0, %s5, %s3
  $region1: #{actor_sample.1} parent=0
    #allocation2 [shape = 'u8[147456]{0}', space=vmem, size = 0x24000, scoped, tag = 'input window, operand 1, single buffered']
    #allocation3 [shape = 's32[1]{0}', space=sflag, size = 0x4, scoped, tag = 'scoped memory for actor_sample.1']
    %7 = vsyncpa [#allocation3], 0
    // Predicated region
    $region2: #{actor_sample.1} parent=1 // pred_check
      _
    $region3: #{actor_sample.1} parent=1 // pred_check_branch
      %9 = sbr.rel (0) target = $region5
    $region4: #{actor_sample.1} parent=1 // pred_region
      _
    $region5: #{actor_sample.1} parent=1 // pred_fallthru
      _
    // Predicated region
    $region6: #{actor_sample.1} parent=1 // pred_check
      _
    $region7: #{actor_sample.1} parent=1 // pred_check_branch
      %11 = sbr.rel (0) target = $region9
    $region8: #{actor_sample.1} parent=1 // pred_region
      %s13 = ssub.s32 4608, 4608
      %14 = vsyncadd [#allocation3], %s13
      %s15 = sshll.u32 [#allocation2], 4
      %s16 = int_to_ptr.vmem [resolvable:$true] %s15
      %21 = dma.hbm_to_vmem [thread:$0]  %s1, 4608, %s16, [#allocation3], 128, 128, 8
    $region9: #{actor_sample.1} parent=1 // pred_fallthru
      _
    // Predicated region
    $region10: #{actor_sample.1} parent=1 // pred_check
      _
    $region11: #{actor_sample.1} parent=1 // pred_check_branch
      %23 = sbr.rel (0) target = $region13
    $region12: #{actor_sample.1} parent=1 // pred_region
      %24 = dma.done [#allocation3], 4608
    $region13: #{actor_sample.1} parent=1 // pred_fallthru
      _
    %v25 = vld [vmem:[%s0] sm:$0xff]
    %v26 = vld [vmem:[#allocation2] sm:$0xff]
    %v27 = vld [vmem:[#allocation2 + $0x8] sm:$0x1]
    %v28 = vlaneseq
    %v29 = vshrl.u32 %v28, 7
    %v30 = vsub.s32 0, %v29
    %v31 = vrot.slane %v27, %v30
    %vm32 = vcmask 64512
    %v34 = vsel %vm32, %v25, 0
    %36 = vmatprep.subr.mxu0 0.0
    %37 = vmatpush1.msra.mxu0 0.0
    %38 = vmatprep.subr.mxu0 0.0
    %39 = vmatpush1.msra.mxu0 0.0
    %40 = vmatprep.subr.mxu0 0.0
    %41 = vmatpush1.msra.mxu0 0.0
    %42 = vmatprep.subr.mxu0 0.0
    %43 = vmatpush1.msra.mxu0 0.0
    %44 = vmatprep.subr.mxu0 0.0
    %45 = vmatpush1.msra.mxu0 0.0
    %46 = vmatprep.subr.mxu0 0.0
    %47 = vmatpush1.msra.mxu0 0.0
    %48 = vmatprep.subr.mxu0 0.0
    %49 = vmatpush1.msra.mxu0 0.0
    %50 = vmatprep.subr.mxu0 0.0
    %51 = vmatpush1.msra.mxu0 0.0
    %52 = vmatprep.subr.mxu0 0.0
    %53 = vmatpush1.msra.mxu0 0.0
    %54 = vmatprep.subr.mxu0 0.0
    %55 = vmatpush1.msra.mxu0 0.0
    %56 = vmatprep.subr.mxu0 0.0
    %57 = vmatpush1.msra.mxu0 0.0
    %58 = vmatprep.subr.mxu0 0.0
    %59 = vmatpush1.msra.mxu0 0.0
    %60 = vmatprep.subr.mxu0 0.0
    %61 = vmatpush1.msra.mxu0 0.0
    %62 = vmatprep.subr.mxu0 0.0
    %63 = vmatpush1.msra.mxu0 0.0
    %64 = vmatprep.subr.mxu0 0.0
    %65 = vmatpush1.msra.mxu0 0.0
    %66 = vmatprep.subr.mxu0 0.0
    %67 = vmatpush1.msra.mxu0 %v26
    %68 = vmatprep.subr.mxu0 0.0
    %69 = vmatpush2.msra.mxu0 0.0
    %70 = vmatprep.subr.mxu0 0.0
    %71 = vmatpush2.msra.mxu0 0.0
    %72 = vmatprep.subr.mxu0 0.0
    %73 = vmatpush2.msra.mxu0 0.0
    %74 = vmatprep.subr.mxu0 0.0
    %75 = vmatpush2.msra.mxu0 0.0
    %76 = vmatprep.subr.mxu0 0.0
    %77 = vmatpush2.msra.mxu0 0.0
    %78 = vmatprep.subr.mxu0 0.0
    %79 = vmatpush2.msra.mxu0 0.0
    %80 = vmatprep.subr.mxu0 0.0
    %81 = vmatpush2.msra.mxu0 0.0
    %82 = vmatprep.subr.mxu0 0.0
    %83 = vmatpush2.msra.mxu0 0.0
    %84 = vmatprep.subr.mxu0 0.0
    %85 = vmatpush2.msra.mxu0 0.0
    %86 = vmatprep.subr.mxu0 0.0
    %87 = vmatpush2.msra.mxu0 0.0
    %88 = vmatprep.subr.mxu0 0.0
    %89 = vmatpush2.msra.mxu0 0.0
    %90 = vmatprep.subr.mxu0 0.0
    %91 = vmatpush2.msra.mxu0 0.0
    %92 = vmatprep.subr.mxu0 0.0
    %93 = vmatpush2.msra.mxu0 0.0
    %94 = vmatprep.subr.mxu0 0.0
    %95 = vmatpush2.msra.mxu0 0.0
    %96 = vmatprep.subr.mxu0 0.0
    %97 = vmatpush2.msra.mxu0 0.0
    %98 = vmatprep.subr.mxu0 0.0
    %99 = vmatpush2.msra.mxu0 0.0
    %100 = vmatprep.mubr.f32.mxu0 0.0
    %101 = vmatmul.mubr.f32.gmra.mxu0 %v34
    %v102 = vpop.f32.mrf.mxu0
    %v103 = vadd.f32 %v31, %v102
    %v104 = vpop.f32.mrf.mxu0
    %105 = vdwg.mxu0
    %v106 = vtanh.pop %v103
    %v107 = vld [vmem:[#allocation2 + $0x10] sm:$0xff]
    %v108 = vld [vmem:[#allocation2 + $0x18] sm:$0xff]
    %v109 = vld [vmem:[#allocation2 + $0x20] sm:$0xff]
    %v110 = vld [vmem:[#allocation2 + $0x28] sm:$0xff]
    %v111 = vld [vmem:[#allocation2 + $0x30] sm:$0xff]
    %v112 = vld [vmem:[#allocation2 + $0x38] sm:$0xff]
    %v113 = vld [vmem:[#allocation2 + $0x40] sm:$0xff]
    %v114 = vld [vmem:[#allocation2 + $0x48] sm:$0xff]
    %v115 = vld [vmem:[#allocation2 + $0x50] sm:$0xff]
    %v116 = vld [vmem:[#allocation2 + $0x58] sm:$0xff]
    %v117 = vld [vmem:[#allocation2 + $0x60] sm:$0xff]
    %v118 = vld [vmem:[#allocation2 + $0x68] sm:$0xff]
    %v119 = vld [vmem:[#allocation2 + $0x70] sm:$0xff]
    %v120 = vld [vmem:[#allocation2 + $0x78] sm:$0xff]
    %v121 = vld [vmem:[#allocation2 + $0x80] sm:$0xff]
    %v122 = vld [vmem:[#allocation2 + $0x88] sm:$0xff]
    %v123 = vld [vmem:[#allocation2 + $0x90] sm:$0x1]
    %v124 = vlaneseq
    %v125 = vshrl.u32 %v124, 7
    %v126 = vsub.s32 0, %v125
    %v127 = vrot.slane %v123, %v126
    %128 = vmatprep.subr.mxu0 0.0
    %129 = vmatpush1.msra.mxu0 %v122
    %130 = vmatprep.subr.mxu0 0.0
    %131 = vmatpush1.msra.mxu0 %v121
    %132 = vmatprep.subr.mxu0 0.0
    %133 = vmatpush1.msra.mxu0 %v120
    %134 = vmatprep.subr.mxu0 0.0
    %135 = vmatpush1.msra.mxu0 %v119
    %136 = vmatprep.subr.mxu0 0.0
    %137 = vmatpush1.msra.mxu0 %v118
    %138 = vmatprep.subr.mxu0 0.0
    %139 = vmatpush1.msra.mxu0 %v117
    %140 = vmatprep.subr.mxu0 0.0
    %141 = vmatpush1.msra.mxu0 %v116
    %142 = vmatprep.subr.mxu0 0.0
    %143 = vmatpush1.msra.mxu0 %v115
    %144 = vmatprep.subr.mxu0 0.0
    %145 = vmatpush1.msra.mxu0 %v114
    %146 = vmatprep.subr.mxu0 0.0
    %147 = vmatpush1.msra.mxu0 %v113
    %148 = vmatprep.subr.mxu0 0.0
    %149 = vmatpush1.msra.mxu0 %v112
    %150 = vmatprep.subr.mxu0 0.0
    %151 = vmatpush1.msra.mxu0 %v111
    %152 = vmatprep.subr.mxu0 0.0
    %153 = vmatpush1.msra.mxu0 %v110
    %154 = vmatprep.subr.mxu0 0.0
    %155 = vmatpush1.msra.mxu0 %v109
    %156 = vmatprep.subr.mxu0 0.0
    %157 = vmatpush1.msra.mxu0 %v108
    %158 = vmatprep.subr.mxu0 0.0
    %159 = vmatpush1.msra.mxu0 %v107
    %160 = vmatprep.subr.mxu0 0.0
    %161 = vmatpush2.msra.mxu0 0.0
    %162 = vmatprep.subr.mxu0 0.0
    %163 = vmatpush2.msra.mxu0 0.0
    %164 = vmatprep.subr.mxu0 0.0
    %165 = vmatpush2.msra.mxu0 0.0
    %166 = vmatprep.subr.mxu0 0.0
    %167 = vmatpush2.msra.mxu0 0.0
    %168 = vmatprep.subr.mxu0 0.0
    %169 = vmatpush2.msra.mxu0 0.0
    %170 = vmatprep.subr.mxu0 0.0
    %171 = vmatpush2.msra.mxu0 0.0
    %172 = vmatprep.subr.mxu0 0.0
    %173 = vmatpush2.msra.mxu0 0.0
    %174 = vmatprep.subr.mxu0 0.0
    %175 = vmatpush2.msra.mxu0 0.0
    %176 = vmatprep.subr.mxu0 0.0
    %177 = vmatpush2.msra.mxu0 0.0
    %178 = vmatprep.subr.mxu0 0.0
    %179 = vmatpush2.msra.mxu0 0.0
    %180 = vmatprep.subr.mxu0 0.0
    %181 = vmatpush2.msra.mxu0 0.0
    %182 = vmatprep.subr.mxu0 0.0
    %183 = vmatpush2.msra.mxu0 0.0
    %184 = vmatprep.subr.mxu0 0.0
    %185 = vmatpush2.msra.mxu0 0.0
    %186 = vmatprep.subr.mxu0 0.0
    %187 = vmatpush2.msra.mxu0 0.0
    %188 = vmatprep.subr.mxu0 0.0
    %189 = vmatpush2.msra.mxu0 0.0
    %190 = vmatprep.subr.mxu0 0.0
    %191 = vmatpush2.msra.mxu0 0.0
    %192 = vmatprep.mubr.f32.mxu0 0.0
    %193 = vmatmul.mubr.f32.gmra.mxu0 %v106
    %v194 = vpop.f32.mrf.mxu0
    %v195 = vadd.f32 %v127, %v194
    %v196 = vpop.f32.mrf.mxu0
    %197 = vdwg.mxu0
    %v198 = vtanh.pop %v195
    %v199 = vld [vmem:[#allocation2 + $0x98] sm:$0xff]
    %v200 = vld [vmem:[#allocation2 + $0xa0] sm:$0xff]
    %v201 = vld [vmem:[#allocation2 + $0xa8] sm:$0xff]
    %v202 = vld [vmem:[#allocation2 + $0xb0] sm:$0xff]
    %v203 = vld [vmem:[#allocation2 + $0xb8] sm:$0xff]
    %v204 = vld [vmem:[#allocation2 + $0xc0] sm:$0xff]
    %v205 = vld [vmem:[#allocation2 + $0xc8] sm:$0xff]
    %v206 = vld [vmem:[#allocation2 + $0xd0] sm:$0xff]
    %v207 = vld [vmem:[#allocation2 + $0xd8] sm:$0xff]
    %v208 = vld [vmem:[#allocation2 + $0xe0] sm:$0xff]
    %v209 = vld [vmem:[#allocation2 + $0xe8] sm:$0xff]
    %v210 = vld [vmem:[#allocation2 + $0xf0] sm:$0xff]
    %v211 = vld [vmem:[#allocation2 + $0xf8] sm:$0xff]
    %v212 = vld [vmem:[#allocation2 + $0x100] sm:$0xff]
    %v213 = vld [vmem:[#allocation2 + $0x108] sm:$0xff]
    %v214 = vld [vmem:[#allocation2 + $0x110] sm:$0xff]
    %v215 = vld [vmem:[#allocation2 + $0x118] sm:$0x1]
    %v216 = vlaneseq
    %v217 = vshrl.u32 %v216, 7
    %v218 = vsub.s32 0, %v217
    %v219 = vrot.slane %v215, %v218
    %220 = vmatprep.subr.mxu0 0.0
    %221 = vmatpush1.msra.mxu0 %v214
    %222 = vmatprep.subr.mxu0 0.0
    %223 = vmatpush1.msra.mxu0 %v213
    %224 = vmatprep.subr.mxu0 0.0
    %225 = vmatpush1.msra.mxu0 %v212
    %226 = vmatprep.subr.mxu0 0.0
    %227 = vmatpush1.msra.mxu0 %v211
    %228 = vmatprep.subr.mxu0 0.0
    %229 = vmatpush1.msra.mxu0 %v210
    %230 = vmatprep.subr.mxu0 0.0
    %231 = vmatpush1.msra.mxu0 %v209
    %232 = vmatprep.subr.mxu0 0.0
    %233 = vmatpush1.msra.mxu0 %v208
    %234 = vmatprep.subr.mxu0 0.0
    %235 = vmatpush1.msra.mxu0 %v207
    %236 = vmatprep.subr.mxu0 0.0
    %237 = vmatpush1.msra.mxu0 %v206
    %238 = vmatprep.subr.mxu0 0.0
    %239 = vmatpush1.msra.mxu0 %v205
    %240 = vmatprep.subr.mxu0 0.0
    %241 = vmatpush1.msra.mxu0 %v204
    %242 = vmatprep.subr.mxu0 0.0
    %243 = vmatpush1.msra.mxu0 %v203
    %244 = vmatprep.subr.mxu0 0.0
    %245 = vmatpush1.msra.mxu0 %v202
    %246 = vmatprep.subr.mxu0 0.0
    %247 = vmatpush1.msra.mxu0 %v201
    %248 = vmatprep.subr.mxu0 0.0
    %249 = vmatpush1.msra.mxu0 %v200
    %250 = vmatprep.subr.mxu0 0.0
    %251 = vmatpush1.msra.mxu0 %v199
    %252 = vmatprep.subr.mxu0 0.0
    %253 = vmatpush2.msra.mxu0 0.0
    %254 = vmatprep.subr.mxu0 0.0
    %255 = vmatpush2.msra.mxu0 0.0
    %256 = vmatprep.subr.mxu0 0.0
    %257 = vmatpush2.msra.mxu0 0.0
    %258 = vmatprep.subr.mxu0 0.0
    %259 = vmatpush2.msra.mxu0 0.0
    %260 = vmatprep.subr.mxu0 0.0
    %261 = vmatpush2.msra.mxu0 0.0
    %262 = vmatprep.subr.mxu0 0.0
    %263 = vmatpush2.msra.mxu0 0.0
    %264 = vmatprep.subr.mxu0 0.0
    %265 = vmatpush2.msra.mxu0 0.0
    %266 = vmatprep.subr.mxu0 0.0
    %267 = vmatpush2.msra.mxu0 0.0
    %268 = vmatprep.subr.mxu0 0.0
    %269 = vmatpush2.msra.mxu0 0.0
    %270 = vmatprep.subr.mxu0 0.0
    %271 = vmatpush2.msra.mxu0 0.0
    %272 = vmatprep.subr.mxu0 0.0
    %273 = vmatpush2.msra.mxu0 0.0
    %274 = vmatprep.subr.mxu0 0.0
    %275 = vmatpush2.msra.mxu0 0.0
    %276 = vmatprep.subr.mxu0 0.0
    %277 = vmatpush2.msra.mxu0 0.0
    %278 = vmatprep.subr.mxu0 0.0
    %279 = vmatpush2.msra.mxu0 0.0
    %280 = vmatprep.subr.mxu0 0.0
    %281 = vmatpush2.msra.mxu0 0.0
    %282 = vmatprep.subr.mxu0 0.0
    %283 = vmatpush2.msra.mxu0 0.0
    %284 = vmatprep.mubr.f32.mxu0 0.0
    %285 = vmatmul.mubr.f32.gmra.mxu0 %v198
    %v286 = vpop.f32.mrf.mxu0
    %v287 = vadd.f32 %v219, %v286
    %v288 = vpop.f32.mrf.mxu0
    %289 = vdwg.mxu0
    %v290 = vlaneseq
    %v291 = vand.u32 %v290, 127
    %vm292 = vcmp.lt.s32.totalorder %v291, 64
    %v293 = vxor.u32 %v287, 2147483648
    %v294 = vmul.f32 %v293, 1.442695
    %v295 = vpow.pop %v294
    %v296 = vadd.f32 %v295, 1.0
    %v297 = vrcp.pop %v296
    %v298 = vmul.f32 1.0, %v297
    %v299 = vsel %vm292, %v298, %v287
    %300 = vst [vmem:[%s2] sm:$0xff] %v299
    // Predicated region
    $region14: #{actor_sample.1} parent=1 // pred_check
      _
    $region15: #{actor_sample.1} parent=1 // pred_check_branch
      %302 = sbr.rel (0) target = $region17
    $region16: #{actor_sample.1} parent=1 // pred_region
      _
    $region17: #{actor_sample.1} parent=1 // pred_fallthru
      _
    // Predicated region
    $region18: #{actor_sample.1} parent=1 // pred_check
      _
    $region19: #{actor_sample.1} parent=1 // pred_check_branch
      %304 = sbr.rel (0) target = $region21
    $region20: #{actor_sample.1} parent=1 // pred_region
      _
    $region21: #{actor_sample.1} parent=1 // pred_fallthru
      _
    %305 = vsyncpa [#allocation3], 1

</llo_original>
